<compile_context>
chip_gen: v6e
topology: v6e:2x2x1
jax: 0.10.0
libtpu: 0.0.40
codegen_flags: <defaults>
</compile_context>

<pallas_src>
import functools

import jax
import jax.numpy as jnp
from jax.experimental import pallas as pl
from jax.experimental.pallas import tpu as pltpu


def _round_up(x, m):
    return ((x + m - 1) // m) * m


def _pick_feat_tile(d_pad128, feat_tile):
    """Largest 128-multiple divisor of d_pad128 that is <= feat_tile, preferring a
    choice that yields >= 2 grid steps (megacore sharding / pipelining)."""
    divisors = [t for t in range(128, d_pad128 + 1, 128) if d_pad128 % t == 0]
    pref = [t for t in divisors if t <= feat_tile and d_pad128 // t >= 2]
    if pref:
        return max(pref)
    small = [t for t in divisors if t <= feat_tile]
    return max(small) if small else d_pad128


def _graphgcn_kernel(a_ref, dinv_ref, h_ref, o_ref):
    # a_ref:    (Np, Np) bf16 adjacency (dst, src), resident across the feature grid.
    # dinv_ref: (Np, 1)  f32 inverse in-degree (0 for zero-in-degree rows), resident.
    # h_ref:    (Np, TD) f32 feature-column block (TD is a 128-multiple -> lane-dense).
    # o_ref:    (Np, TD) f32 output block.
    a = a_ref[...]                                   # bf16, fed straight to the MXU
    dinv = dinv_ref[...]                             # (Np, 1) f32
    h = h_ref[...].astype(jnp.bfloat16)              # narrow the small block, not A

    x1 = jnp.dot(a, h, preferred_element_type=jnp.float32) * dinv            # layer 1
    x2 = jnp.dot(a, x1.astype(jnp.bfloat16),
                 preferred_element_type=jnp.float32) * dinv                  # layer 2
    o_ref[...] = (0.5 * (x1 + x2)).astype(o_ref.dtype)


@functools.partial(jax.jit, static_argnames=("feat_tile", "single_buffer_a"))
def graphgcn_forward(adj, features, *, feat_tile=512, single_buffer_a=True):
    """adj: (N, N) dense 0/1 adjacency, adj[dst, src] != 0 iff edge src->dst.
    features: (N, D) node features. Returns (N, D) float32."""
    n, d = features.shape

    # MXU/lane friendly padding of the node dim (contraction + lane dim of A).
    n_pad = 128 if n <= 128 else _round_up(n, 256)

    d_pad = _round_up(d, 128)
    td = _pick_feat_tile(d_pad, feat_tile)

    # Generation-aware VMEM cap (v5e/v6e: 128 MiB, v7x: 64 MiB per TC).
    try:
        vmem_cap = int(pltpu.get_tpu_info().vmem_capacity_bytes)
    except Exception:
        vmem_cap = 64 << 20  # conservative lower bound across generations

    a_buffers = 1 if single_buffer_a else 2

    def footprint(td_):
        return (a_buffers * n_pad * n_pad * 2       # resident bf16 A
                + 2 * n_pad * 4                     # resident dinv
                + 2 * 2 * n_pad * td_ * 4           # double-buffered H + out blocks
                + 3 * n_pad * td_ * 4)              # x1 / x2 f32 + bf16 h temporaries

    while footprint(td) > vmem_cap - (4 << 20) and td > 128:
        td = _pick_feat_tile(d_pad, td - 128)       # next smaller 128-multiple divisor
    # TODO(synk): if A alone exceeds VMEM (N beyond ~5-6k bf16 on v7x), switch to a
    # row/K-tiled two-pass matmul structure that streams A instead of pinning it.
    # TODO(synk): int8 A on v5e/v6e (native int8 MXU) / fp8 on v7x would halve A again.

    grid = (d_pad // td,)

    # bf16 adjacency: 0/1 entries are exact in bf16, halving HBM traffic + residency
    # for the dominant term; weighted (non-0/1) edges would be rounded.
    adj_f32 = adj.astype(jnp.float32)
    a_p = jnp.zeros((n_pad, n_pad), jnp.bfloat16).at[:n, :n].set(adj_f32.astype(jnp.bfloat16))
    h_p = jnp.zeros((n_pad, d_pad), jnp.float32).at[:n, :d].set(features.astype(jnp.float32))

    # In-degree normalization hoisted out of the kernel: fuses with the pad/cast pass
    # over adj, rides into the kernel as a tiny resident block.
    deg = jnp.sum(adj_f32, axis=1, keepdims=True)
    dinv = jnp.where(deg > 0, 1.0 / jnp.maximum(deg, 1.0), 0.0)
    dinv_p = jnp.zeros((n_pad, 1), jnp.float32).at[:n, :].set(dinv)

    a_spec_kwargs = {}
    if single_buffer_a:
        # Constant index_map -> A is never re-DMA'd; single-buffering halves its VMEM.
        a_spec_kwargs["pipeline_mode"] = pl.Buffered(1)
    a_spec = pl.BlockSpec((n_pad, n_pad), lambda j: (0, 0), **a_spec_kwargs)
    dinv_spec = pl.BlockSpec((n_pad, 1), lambda j: (0, 0))

    # TODO(synk): with 1-2 grid steps the one-shot A DMA is exposed before compute;
    # an in-body pltpu.emit_pipeline over A row-chunks would hide it behind MXU work.

    vmem_limit = int(min(vmem_cap, max(32 << 20, int(footprint(td) * 1.25))))

    out_p = pl.pallas_call(
        _graphgcn_kernel,
        out_shape=jax.ShapeDtypeStruct((n_pad, d_pad), jnp.float32),
        grid=grid,
        in_specs=[
            a_spec,
            dinv_spec,
            pl.BlockSpec((n_pad, td), lambda j: (0, j)),
        ],
        out_specs=pl.BlockSpec((n_pad, td), lambda j: (0, j)),
        compiler_params=pltpu.CompilerParams(
            dimension_semantics=("parallel",),   # feature blocks shard across v7x's 2 TCs
            vmem_limit_bytes=vmem_limit,
        ),
        cost_estimate=pl.CostEstimate(
            flops=4 * n_pad * n_pad * d_pad,
            transcendentals=0,
            bytes_accessed=2 * n_pad * n_pad + 8 * n_pad * d_pad + 4 * n_pad,
        ),
    )(a_p, dinv_p, h_p)

    return out_p[:n, :d]


def graphgcn_reference(adj, features):
    """Pure-JAX f32 reference of the same forward pass."""
    adj = adj.astype(jnp.float32)
    deg = jnp.sum(adj, axis=1, keepdims=True)
    deg_inv = jnp.where(deg > 0, 1.0 / jnp.maximum(deg, 1.0), 0.0)
    x1 = (adj @ features) * deg_inv
    x2 = (adj @ x1) * deg_inv
    return 0.5 * (x1 + x2)


if __name__ == "__main__":
    key = jax.random.PRNGKey(0)
    k_adj, k_feat = jax.random.split(key)

    N = 16   # graph nodes
    D = 32   # feature dimension (preserved: this GCN has no learnable weights)

    # Deterministic random 0/1 graph (~30% density, no self loops), dense adjacency.
    adj = (jax.random.uniform(k_adj, (N, N)) < 0.3).astype(jnp.float32)
    adj = adj * (1.0 - jnp.eye(N, dtype=jnp.float32))
    features = jax.random.normal(k_feat, (N, D), dtype=jnp.float32)

    try:
        out = jax.block_until_ready(graphgcn_forward(adj, features))
    except Exception:
        # pl.Buffered(1) (single-buffered resident A) may be unavailable on some jax
        # versions; retry with the default double-buffered BlockSpec.
        out = jax.block_until_ready(graphgcn_forward(adj, features, single_buffer_a=False))

    ref = graphgcn_reference(adj, features)
    assert out.shape == (N, D), out.shape
    # A is exact in bf16 (0/1); H and x1 are rounded to bf16 for the fast MXU path,
    # so the tolerance vs. the f32 reference is loosened accordingly.
    assert jnp.allclose(out, ref, atol=3e-2, rtol=3e-2), float(jnp.max(jnp.abs(out - ref)))

    print("KERNEL_OK")
</pallas_src>

<mosaic_0001>
module attributes {stable_mosaic.version = 11 : i64} {
  func.func @_graphgcn_kernel(%arg0: i32, %arg1: memref<128x128xbf16, #tpu.memory_space<vmem>>, %arg2: memref<128x1xf32, #tpu.memory_space<vmem>>, %arg3: memref<128x128xf32, #tpu.memory_space<vmem>>, %arg4: memref<128x128xf32, #tpu.memory_space<vmem>>) attributes {dimension_semantics = [#tpu.dimension_semantics<parallel>], iteration_bounds = array<i64: 1>, scalar_prefetch = 0 : i64, scratch_operands = 0 : i64, tpu.core_type = #tpu.core_type<tc>, window_params = [{pipeline_mode = #tpu.pipeline_mode<synchronous>, transform_indices = @transform_0, window_bounds = array<i64: 128, 128>}, {pipeline_mode = #tpu.pipeline_mode<synchronous>, transform_indices = @transform_1, window_bounds = array<i64: 128, 1>}, {transform_indices = @transform_2, window_bounds = array<i64: 128, 128>}, {transform_indices = @transform_3, window_bounds = array<i64: 128, 128>}]} {
    %c0 = arith.constant 0 : index
    %c0_0 = arith.constant 0 : index
    %0 = vector.load %arg1[%c0, %c0_0] : memref<128x128xbf16, #tpu.memory_space<vmem>>, vector<128x128xbf16>
    %c0_1 = arith.constant 0 : index
    %c0_2 = arith.constant 0 : index
    %1 = vector.load %arg2[%c0_1, %c0_2] : memref<128x1xf32, #tpu.memory_space<vmem>>, vector<128x1xf32>
    %c0_3 = arith.constant 0 : index
    %c0_4 = arith.constant 0 : index
    %2 = vector.load %arg3[%c0_3, %c0_4] : memref<128x128xf32, #tpu.memory_space<vmem>>, vector<128x128xf32>
    %3 = arith.truncf %2 : vector<128x128xf32> to vector<128x128xbf16>
    %cst = arith.constant dense<0.000000e+00> : vector<128x128xf32>
    %4 = tpu.matmul %0, %3, %cst {dimension_numbers = #tpu.dot_dimension_numbers<[1], [0], [0], [1], [0, 0, 1, 1], [], []>} : vector<128x128xbf16>, vector<128x128xbf16>, vector<128x128xf32> -> vector<128x128xf32>
    %5 = vector.broadcast %1 : vector<128x1xf32> to vector<128x128xf32>
    %6 = arith.mulf %4, %5 : vector<128x128xf32>
    %7 = arith.truncf %6 : vector<128x128xf32> to vector<128x128xbf16>
    %cst_5 = arith.constant dense<0.000000e+00> : vector<128x128xf32>
    %8 = tpu.matmul %0, %7, %cst_5 {dimension_numbers = #tpu.dot_dimension_numbers<[1], [0], [0], [1], [0, 0, 1, 1], [], []>} : vector<128x128xbf16>, vector<128x128xbf16>, vector<128x128xf32> -> vector<128x128xf32>
    %9 = vector.broadcast %1 : vector<128x1xf32> to vector<128x128xf32>
    %10 = arith.mulf %8, %9 : vector<128x128xf32>
    %11 = arith.addf %6, %10 : vector<128x128xf32>
    %cst_6 = arith.constant 5.000000e-01 : f32
    %12 = vector.broadcast %cst_6 : f32 to vector<128x128xf32>
    %13 = arith.mulf %12, %11 : vector<128x128xf32>
    %c0_7 = arith.constant 0 : index
    %c0_8 = arith.constant 0 : index
    %14 = vector.load %arg4[%c0_7, %c0_8] : memref<128x128xf32, #tpu.memory_space<vmem>>, vector<128x128xf32>
    tpu.vector_store %arg4[%c0_7, %c0_8], %13 {strides = array<i32>} : memref<128x128xf32, #tpu.memory_space<vmem>>, vector<128x128xf32>,
    return
  }
  func.func @transform_0(%arg0: i32) -> (i32, i32) {
    %c0_i32 = arith.constant 0 : i32
    %c0_i32_0 = arith.constant 0 : i32
    %c0_i32_1 = arith.constant 0 : i32
    return %c0_i32, %c0_i32_0 : i32, i32
  }
  func.func @transform_1(%arg0: i32) -> (i32, i32) {
    %c0_i32 = arith.constant 0 : i32
    %c0_i32_0 = arith.constant 0 : i32
    %c0_i32_1 = arith.constant 0 : i32
    return %c0_i32, %c0_i32_0 : i32, i32
  }
  func.func @transform_2(%arg0: i32) -> (i32, i32) {
    %c0_i32 = arith.constant 0 : i32
    %c0_i32_0 = arith.constant 0 : i32
    return %c0_i32, %arg0 : i32, i32
  }
  func.func @transform_3(%arg0: i32) -> (i32, i32) {
    %c0_i32 = arith.constant 0 : i32
    %c0_i32_0 = arith.constant 0 : i32
    return %c0_i32, %arg0 : i32, i32
  }
}

module attributes {stable_mosaic.version = 11 : i64} {
  func.func @_graphgcn_kernel(%arg0: i32, %arg1: memref<128x128xbf16, #tpu.memory_space<vmem>>, %arg2: memref<128x1xf32, #tpu.memory_space<vmem>>, %arg3: memref<128x128xf32, #tpu.memory_space<vmem>>, %arg4: memref<128x128xf32, #tpu.memory_space<vmem>>) attributes {dimension_semantics = [#tpu.dimension_semantics<parallel>], iteration_bounds = array<i64: 1>, scalar_prefetch = 0 : i64, scratch_operands = 0 : i64, tpu.core_type = #tpu.core_type<tc>, window_params = [{pipeline_mode = #tpu.pipeline_mode<synchronous>, transform_indices = @transform_0, window_bounds = array<i64: 128, 128>}, {pipeline_mode = #tpu.pipeline_mode<synchronous>, transform_indices = @transform_1, window_bounds = array<i64: 128, 1>}, {transform_indices = @transform_2, window_bounds = array<i64: 128, 128>}, {transform_indices = @transform_3, window_bounds = array<i64: 128, 128>}]} {
    %c0 = arith.constant 0 : index
    %c0_0 = arith.constant 0 : index
    %0 = vector.load %arg1[%c0, %c0_0] : memref<128x128xbf16, #tpu.memory_space<vmem>>, vector<128x128xbf16>
    %c0_1 = arith.constant 0 : index
    %c0_2 = arith.constant 0 : index
    %1 = vector.load %arg2[%c0_1, %c0_2] : memref<128x1xf32, #tpu.memory_space<vmem>>, vector<128x1xf32>
    %c0_3 = arith.constant 0 : index
    %c0_4 = arith.constant 0 : index
    %2 = vector.load %arg3[%c0_3, %c0_4] : memref<128x128xf32, #tpu.memory_space<vmem>>, vector<128x128xf32>
    %3 = arith.truncf %2 : vector<128x128xf32> to vector<128x128xbf16>
    %cst = arith.constant dense<0.000000e+00> : vector<128x128xf32>
    %4 = tpu.matmul %0, %3, %cst {dimension_numbers = #tpu.dot_dimension_numbers<[1], [0], [0], [1], [0, 0, 1, 1], [], []>} : vector<128x128xbf16>, vector<128x128xbf16>, vector<128x128xf32> -> vector<128x128xf32>
    %5 = vector.broadcast %1 : vector<128x1xf32> to vector<128x128xf32>
    %6 = arith.mulf %4, %5 : vector<128x128xf32>
    %7 = arith.truncf %6 : vector<128x128xf32> to vector<128x128xbf16>
    %cst_5 = arith.constant dense<0.000000e+00> : vector<128x128xf32>
    %8 = tpu.matmul %0, %7, %cst_5 {dimension_numbers = #tpu.dot_dimension_numbers<[1], [0], [0], [1], [0, 0, 1, 1], [], []>} : vector<128x128xbf16>, vector<128x128xbf16>, vector<128x128xf32> -> vector<128x128xf32>
    %9 = vector.broadcast %1 : vector<128x1xf32> to vector<128x128xf32>
    %10 = arith.mulf %8, %9 : vector<128x128xf32>
    %11 = arith.addf %6, %10 : vector<128x128xf32>
    %cst_6 = arith.constant 5.000000e-01 : f32
    %12 = vector.broadcast %cst_6 : f32 to vector<128x128xf32>
    %13 = arith.mulf %12, %11 : vector<128x128xf32>
    %c0_7 = arith.constant 0 : index
    %c0_8 = arith.constant 0 : index
    %14 = vector.load %arg4[%c0_7, %c0_8] : memref<128x128xf32, #tpu.memory_space<vmem>>, vector<128x128xf32>
    tpu.vector_store %arg4[%c0_7, %c0_8], %13 {strides = array<i32>} : memref<128x128xf32, #tpu.memory_space<vmem>>, vector<128x128xf32>,
    return
  }
  func.func @transform_0(%arg0: i32) -> (i32, i32) {
    %c0_i32 = arith.constant 0 : i32
    %c0_i32_0 = arith.constant 0 : i32
    %c0_i32_1 = arith.constant 0 : i32
    return %c0_i32, %c0_i32_0 : i32, i32
  }
  func.func @transform_1(%arg0: i32) -> (i32, i32) {
    %c0_i32 = arith.constant 0 : i32
    %c0_i32_0 = arith.constant 0 : i32
    %c0_i32_1 = arith.constant 0 : i32
    return %c0_i32, %c0_i32_0 : i32, i32
  }
  func.func @transform_2(%arg0: i32) -> (i32, i32) {
    %c0_i32 = arith.constant 0 : i32
    %c0_i32_0 = arith.constant 0 : i32
    return %c0_i32, %arg0 : i32, i32
  }
  func.func @transform_3(%arg0: i32) -> (i32, i32) {
    %c0_i32 = arith.constant 0 : i32
    %c0_i32_0 = arith.constant 0 : i32
    return %c0_i32, %arg0 : i32, i32
  }
}

</mosaic_0001>

<llo_original>
// kernel: graphgcn_forward.1
$region0: #{graphgcn_forward.1}
  #allocation0 [shape = 'u32[]', space=smem, size = 0x4, offset = 0x4, fixed_abs, tag = 'smem constant byte address 0x4 - core index']
  #allocation1 [shape = 'u32[144,128]{1,0:T(1,128)}', space=vmem, size = 0x12000, scoped, tag = 'internal scratch']
  %s0 = inlined_call_operand.vmem [shape: bf16[128,128], index: 0, kind: input, shape index: {}]
  %s1 = inlined_call_operand.vmem [shape: f32[128,1], index: 1, kind: input, shape index: {}]
  %s2 = inlined_call_operand.vmem [shape: f32[128,128], index: 2, kind: input, shape index: {}]
  %s3 = inlined_call_operand.vmem [shape: f32[128,128], index: 3, kind: output, shape index: {}]
  %s4 = sld [smem:[#allocation0]]
  $region22: #{graphgcn_forward.1} parent=0
    _
  %s6 = ssub.s32 1, %s4
  %s7 = scalar_select 0, %s6, %s4
  // Predicated region
  $region2: #{graphgcn_forward.1} parent=0 // pred_check
    _
  $region3: #{graphgcn_forward.1} parent=0 // pred_check_branch
    %9 = sbr.rel (0) target = $region5
  $region4: #{graphgcn_forward.1} parent=0 // pred_region
    _
  $region5: #{graphgcn_forward.1} parent=0 // pred_fallthru
    _
  // Predicated region
  $region6: #{graphgcn_forward.1} parent=0 // pred_check
    _
  $region7: #{graphgcn_forward.1} parent=0 // pred_check_branch
    %11 = sbr.rel (0) target = $region9
  $region8: #{graphgcn_forward.1} parent=0 // pred_region
    _
  $region9: #{graphgcn_forward.1} parent=0 // pred_fallthru
    _
  // Predicated region
  $region10: #{graphgcn_forward.1} parent=0 // pred_check
    _
  $region11: #{graphgcn_forward.1} parent=0 // pred_check_branch
    %13 = sbr.rel (0) target = $region13
  $region12: #{graphgcn_forward.1} parent=0 // pred_region
    _
  $region13: #{graphgcn_forward.1} parent=0 // pred_fallthru
    _
  %v15 = vld [vmem:[%s0] sm:$0xf]
  %v16 = vld [vmem:[%s0 + $0x4] sm:$0xf]
  %v17 = vld [vmem:[%s0 + $0x8] sm:$0xf]
  %v18 = vld [vmem:[%s0 + $0xc] sm:$0xf]
  %v19 = vld [vmem:[%s0 + $0x10] sm:$0xf]
  %v20 = vld [vmem:[%s0 + $0x14] sm:$0xf]
  %v21 = vld [vmem:[%s0 + $0x18] sm:$0xf]
  %v22 = vld [vmem:[%s0 + $0x1c] sm:$0xf]
  %v23 = vld [vmem:[%s0 + $0x20] sm:$0xf]
  %v24 = vld [vmem:[%s0 + $0x24] sm:$0xf]
  %v25 = vld [vmem:[%s0 + $0x28] sm:$0xf]
  %v26 = vld [vmem:[%s0 + $0x2c] sm:$0xf]
  %v27 = vld [vmem:[%s0 + $0x30] sm:$0xf]
  %v28 = vld [vmem:[%s0 + $0x34] sm:$0xf]
  %v29 = vld [vmem:[%s0 + $0x38] sm:$0xf]
  %v30 = vld [vmem:[%s0 + $0x3c] sm:$0xf]
  %v31 = vld [vmem:[%s1] sm:$0xff]
  %v32 = vld [vmem:[%s1 + $0x8] sm:$0xff]
  %v33 = vld [vmem:[%s1 + $0x10] sm:$0xff]
  %v34 = vld [vmem:[%s1 + $0x18] sm:$0xff]
  %v35 = vld [vmem:[%s1 + $0x20] sm:$0xff]
  %v36 = vld [vmem:[%s1 + $0x28] sm:$0xff]
  %v37 = vld [vmem:[%s1 + $0x30] sm:$0xff]
  %v38 = vld [vmem:[%s1 + $0x38] sm:$0xff]
  %v39 = vld [vmem:[%s1 + $0x40] sm:$0xff]
  %v40 = vld [vmem:[%s1 + $0x48] sm:$0xff]
  %v41 = vld [vmem:[%s1 + $0x50] sm:$0xff]
  %v42 = vld [vmem:[%s1 + $0x58] sm:$0xff]
  %v43 = vld [vmem:[%s1 + $0x60] sm:$0xff]
  %v44 = vld [vmem:[%s1 + $0x68] sm:$0xff]
  %v45 = vld [vmem:[%s1 + $0x70] sm:$0xff]
  %v46 = vld [vmem:[%s1 + $0x78] sm:$0xff]
  %v47 = vld [vmem:[%s2] sm:$0xff]
  %v48 = vld [vmem:[%s2 + $0x8] sm:$0xff]
  %v49 = vld [vmem:[%s2 + $0x10] sm:$0xff]
  %v50 = vld [vmem:[%s2 + $0x18] sm:$0xff]
  %v51 = vld [vmem:[%s2 + $0x20] sm:$0xff]
  %v52 = vld [vmem:[%s2 + $0x28] sm:$0xff]
  %v53 = vld [vmem:[%s2 + $0x30] sm:$0xff]
  %v54 = vld [vmem:[%s2 + $0x38] sm:$0xff]
  %v55 = vld [vmem:[%s2 + $0x40] sm:$0xff]
  %v56 = vld [vmem:[%s2 + $0x48] sm:$0xff]
  %v57 = vld [vmem:[%s2 + $0x50] sm:$0xff]
  %v58 = vld [vmem:[%s2 + $0x58] sm:$0xff]
  %v59 = vld [vmem:[%s2 + $0x60] sm:$0xff]
  %v60 = vld [vmem:[%s2 + $0x68] sm:$0xff]
  %v61 = vld [vmem:[%s2 + $0x70] sm:$0xff]
  %v62 = vld [vmem:[%s2 + $0x78] sm:$0xff]
  %v63 = vpack.c.bf16 %v48, %v47
  %v64 = vpack.c.bf16 %v50, %v49
  %v65 = vpack.c.bf16 %v52, %v51
  %v66 = vpack.c.bf16 %v54, %v53
  %v67 = vpack.c.bf16 %v56, %v55
  %v68 = vpack.c.bf16 %v58, %v57
  %v69 = vpack.c.bf16 %v60, %v59
  %v70 = vpack.c.bf16 %v62, %v61
  %v87 = vunpack.c.l.b16 %v15
  %v88 = vunpack.c.l.b16 %v16
  %v89 = vunpack.c.l.b16 %v17
  %v90 = vunpack.c.l.b16 %v18
  %v91 = vunpack.c.l.b16 %v19
  %v92 = vunpack.c.l.b16 %v20
  %v93 = vunpack.c.l.b16 %v21
  %v94 = vunpack.c.l.b16 %v22
  %v95 = vunpack.c.l.b16 %v23
  %v96 = vunpack.c.l.b16 %v24
  %v97 = vunpack.c.l.b16 %v25
  %v98 = vunpack.c.l.b16 %v26
  %v99 = vunpack.c.l.b16 %v27
  %v100 = vunpack.c.l.b16 %v28
  %v101 = vunpack.c.l.b16 %v29
  %v102 = vunpack.c.l.b16 %v30
  %v103 = vpack.c.b16 %v88, %v87
  %v104 = vpack.c.b16 %v90, %v89
  %v105 = vpack.c.b16 %v92, %v91
  %v106 = vpack.c.b16 %v94, %v93
  %v107 = vpack.c.b16 %v96, %v95
  %v108 = vpack.c.b16 %v98, %v97
  %v109 = vpack.c.b16 %v100, %v99
  %v110 = vpack.c.b16 %v102, %v101
  %119 = vmatprep.subr.bf16.mxu0 0
  %120 = vmatpush1.bf16.msra.mxu0 %v70
  %121 = vmatprep.subr.bf16.mxu0 0
  %122 = vmatpush1.bf16.msra.mxu0 %v69
  %123 = vmatprep.subr.bf16.mxu0 0
  %124 = vmatpush1.bf16.msra.mxu0 %v68
  %125 = vmatprep.subr.bf16.mxu0 0
  %126 = vmatpush1.bf16.msra.mxu0 %v67
  %127 = vmatprep.subr.bf16.mxu0 0
  %128 = vmatpush1.bf16.msra.mxu0 %v66
  %129 = vmatprep.subr.bf16.mxu0 0
  %130 = vmatpush1.bf16.msra.mxu0 %v65
  %131 = vmatprep.subr.bf16.mxu0 0
  %132 = vmatpush1.bf16.msra.mxu0 %v64
  %133 = vmatprep.subr.bf16.mxu0 0
  %134 = vmatpush1.bf16.msra.mxu0 %v63
  %135 = vmatprep.subr.bf16.mxu0 0
  %136 = vmatpush2.bf16.msra.mxu0 0
  %137 = vmatprep.subr.bf16.mxu0 0
  %138 = vmatpush2.bf16.msra.mxu0 0
  %139 = vmatprep.subr.bf16.mxu0 0
  %140 = vmatpush2.bf16.msra.mxu0 0
  %141 = vmatprep.subr.bf16.mxu0 0
  %142 = vmatpush2.bf16.msra.mxu0 0
  %143 = vmatprep.subr.bf16.mxu0 0
  %144 = vmatpush2.bf16.msra.mxu0 0
  %145 = vmatprep.subr.bf16.mxu0 0
  %146 = vmatpush2.bf16.msra.mxu0 0
  %147 = vmatprep.subr.bf16.mxu0 0
  %148 = vmatpush2.bf16.msra.mxu0 0
  %149 = vmatprep.subr.bf16.mxu0 0
  %150 = vmatpush2.bf16.msra.mxu0 0
  %151 = vmatprep.mubr.bf16.mxu0 0
  %152 = vmatmul.mubr.bf16.gmra.mxu0 %v103
  %v153 = vpop.f32.mrf.mxu0
  %v154 = vadd.f32 0.0, %v153
  %v155 = vpop.f32.mrf.mxu0
  %v156 = vpop.f32.mrf.mxu0
  %v157 = vadd.f32 0.0, %v156
  %v158 = vpop.f32.mrf.mxu0
  %159 = vmatprep.mubr.bf16.mxu0 0
  %160 = vmatmul.mubr.bf16.gmra.mxu0 %v104
  %v161 = vpop.f32.mrf.mxu0
  %v162 = vadd.f32 0.0, %v161
  %v163 = vpop.f32.mrf.mxu0
  %v164 = vpop.f32.mrf.mxu0
  %v165 = vadd.f32 0.0, %v164
  %v166 = vpop.f32.mrf.mxu0
  %167 = vmatprep.mubr.bf16.mxu0 0
  %168 = vmatmul.mubr.bf16.gmra.mxu0 %v105
  %v169 = vpop.f32.mrf.mxu0
  %v170 = vadd.f32 0.0, %v169
  %v171 = vpop.f32.mrf.mxu0
  %v172 = vpop.f32.mrf.mxu0
  %v173 = vadd.f32 0.0, %v172
  %v174 = vpop.f32.mrf.mxu0
  %175 = vmatprep.mubr.bf16.mxu0 0
  %176 = vmatmul.mubr.bf16.gmra.mxu0 %v106
  %v177 = vpop.f32.mrf.mxu0
  %v178 = vadd.f32 0.0, %v177
  %v179 = vpop.f32.mrf.mxu0
  %v180 = vpop.f32.mrf.mxu0
  %v181 = vadd.f32 0.0, %v180
  %v182 = vpop.f32.mrf.mxu0
  %183 = vmatprep.mubr.bf16.mxu0 0
  %184 = vmatmul.mubr.bf16.gmra.mxu0 %v107
  %v185 = vpop.f32.mrf.mxu0
  %v186 = vadd.f32 0.0, %v185
  %v187 = vpop.f32.mrf.mxu0
  %v188 = vpop.f32.mrf.mxu0
  %v189 = vadd.f32 0.0, %v188
  %v190 = vpop.f32.mrf.mxu0
  %191 = vmatprep.mubr.bf16.mxu0 0
  %192 = vmatmul.mubr.bf16.gmra.mxu0 %v108
  %v193 = vpop.f32.mrf.mxu0
  %v194 = vadd.f32 0.0, %v193
  %v195 = vpop.f32.mrf.mxu0
  %v196 = vpop.f32.mrf.mxu0
  %v197 = vadd.f32 0.0, %v196
  %v198 = vpop.f32.mrf.mxu0
  %199 = vmatprep.mubr.bf16.mxu0 0
  %200 = vmatmul.mubr.bf16.gmra.mxu0 %v109
  %v201 = vpop.f32.mrf.mxu0
  %v202 = vadd.f32 0.0, %v201
  %v203 = vpop.f32.mrf.mxu0
  %v204 = vpop.f32.mrf.mxu0
  %v205 = vadd.f32 0.0, %v204
  %v206 = vpop.f32.mrf.mxu0
  %207 = vmatprep.mubr.bf16.mxu0 0
  %208 = vmatmul.mubr.bf16.gmra.mxu0 %v110
  %v209 = vpop.f32.mrf.mxu0
  %v210 = vadd.f32 0.0, %v209
  %v211 = vpop.f32.mrf.mxu0
  %v212 = vpop.f32.mrf.mxu0
  %v213 = vadd.f32 0.0, %v212
  %v214 = vpop.f32.mrf.mxu0
  %215 = vdwg.mxu0
  %217 = vset.pattern.permute.xlu0 0
  %218 = vperm.xlu0 %217, %v31
  %v219 = vpop.permute.xlu0 %218
  %222 = vset.pattern.permute.xlu0 0
  %223 = vperm.xlu0 %222, %v32
  %v224 = vpop.permute.xlu0 %223
  %227 = vset.pattern.permute.xlu0 0
  %228 = vperm.xlu0 %227, %v33
  %v229 = vpop.permute.xlu0 %228
  %232 = vset.pattern.permute.xlu0 0
  %233 = vperm.xlu0 %232, %v34
  %v234 = vpop.permute.xlu0 %233
  %237 = vset.pattern.permute.xlu0 0
  %238 = vperm.xlu0 %237, %v35
  %v239 = vpop.permute.xlu0 %238
  %242 = vset.pattern.permute.xlu0 0
  %243 = vperm.xlu0 %242, %v36
  %v244 = vpop.permute.xlu0 %243
  %247 = vset.pattern.permute.xlu0 0
  %248 = vperm.xlu0 %247, %v37
  %v249 = vpop.permute.xlu0 %248
  %252 = vset.pattern.permute.xlu0 0
  %253 = vperm.xlu0 %252, %v38
  %v254 = vpop.permute.xlu0 %253
  %257 = vset.pattern.permute.xlu0 0
  %258 = vperm.xlu0 %257, %v39
  %v259 = vpop.permute.xlu0 %258
  %262 = vset.pattern.permute.xlu0 0
  %263 = vperm.xlu0 %262, %v40
  %v264 = vpop.permute.xlu0 %263
  %267 = vset.pattern.permute.xlu0 0
  %268 = vperm.xlu0 %267, %v41
  %v269 = vpop.permute.xlu0 %268
  %272 = vset.pattern.permute.xlu0 0
  %273 = vperm.xlu0 %272, %v42
  %v274 = vpop.permute.xlu0 %273
  %277 = vset.pattern.permute.xlu0 0
  %278 = vperm.xlu0 %277, %v43
  %v279 = vpop.permute.xlu0 %278
  %282 = vset.pattern.permute.xlu0 0
  %283 = vperm.xlu0 %282, %v44
  %v284 = vpop.permute.xlu0 %283
  %287 = vset.pattern.permute.xlu0 0
  %288 = vperm.xlu0 %287, %v45
  %v289 = vpop.permute.xlu0 %288
  %292 = vset.pattern.permute.xlu0 0
  %293 = vperm.xlu0 %292, %v46
  %v294 = vpop.permute.xlu0 %293
  %v296 = vmul.f32 %v154, %v219
  %v297 = vmul.f32 %v157, %v224
  %v298 = vmul.f32 %v162, %v229
  %v299 = vmul.f32 %v165, %v234
  %v300 = vmul.f32 %v170, %v239
  %v301 = vmul.f32 %v173, %v244
  %v302 = vmul.f32 %v178, %v249
  %v303 = vmul.f32 %v181, %v254
  %v304 = vmul.f32 %v186, %v259
  %v305 = vmul.f32 %v189, %v264
  %v306 = vmul.f32 %v194, %v269
  %v307 = vmul.f32 %v197, %v274
  %v308 = vmul.f32 %v202, %v279
  %v309 = vmul.f32 %v205, %v284
  %v310 = vmul.f32 %v210, %v289
  %v311 = vmul.f32 %v213, %v294
  %v312 = vpack.c.bf16 %v297, %v296
  %v313 = vpack.c.bf16 %v299, %v298
  %v314 = vpack.c.bf16 %v301, %v300
  %v315 = vpack.c.bf16 %v303, %v302
  %v316 = vpack.c.bf16 %v305, %v304
  %v317 = vpack.c.bf16 %v307, %v306
  %v318 = vpack.c.bf16 %v309, %v308
  %v319 = vpack.c.bf16 %v311, %v310
  %320 = vmatprep.subr.bf16.mxu0 0
  %321 = vmatpush1.bf16.msra.mxu0 %v319
  %322 = vmatprep.subr.bf16.mxu0 0
  %323 = vmatpush1.bf16.msra.mxu0 %v318
  %324 = vmatprep.subr.bf16.mxu0 0
  %325 = vmatpush1.bf16.msra.mxu0 %v317
  %326 = vmatprep.subr.bf16.mxu0 0
  %327 = vmatpush1.bf16.msra.mxu0 %v316
  %328 = vmatprep.subr.bf16.mxu0 0
  %329 = vmatpush1.bf16.msra.mxu0 %v315
  %330 = vmatprep.subr.bf16.mxu0 0
  %331 = vmatpush1.bf16.msra.mxu0 %v314
  %332 = vmatprep.subr.bf16.mxu0 0
  %333 = vmatpush1.bf16.msra.mxu0 %v313
  %334 = vmatprep.subr.bf16.mxu0 0
  %335 = vmatpush1.bf16.msra.mxu0 %v312
  %336 = vmatprep.subr.bf16.mxu0 0
  %337 = vmatpush2.bf16.msra.mxu0 0
  %338 = vmatprep.subr.bf16.mxu0 0
  %339 = vmatpush2.bf16.msra.mxu0 0
  %340 = vmatprep.subr.bf16.mxu0 0
  %341 = vmatpush2.bf16.msra.mxu0 0
  %342 = vmatprep.subr.bf16.mxu0 0
  %343 = vmatpush2.bf16.msra.mxu0 0
  %344 = vmatprep.subr.bf16.mxu0 0
  %345 = vmatpush2.bf16.msra.mxu0 0
  %346 = vmatprep.subr.bf16.mxu0 0
  %347 = vmatpush2.bf16.msra.mxu0 0
  %348 = vmatprep.subr.bf16.mxu0 0
  %349 = vmatpush2.bf16.msra.mxu0 0
  %350 = vmatprep.subr.bf16.mxu0 0
  %351 = vmatpush2.bf16.msra.mxu0 0
  %352 = vmatprep.mubr.bf16.mxu0 0
  %353 = vmatmul.mubr.bf16.gmra.mxu0 %v103
  %v354 = vpop.f32.mrf.mxu0
  %v355 = vadd.f32 0.0, %v354
  %v356 = vpop.f32.mrf.mxu0
  %v357 = vpop.f32.mrf.mxu0
  %v358 = vadd.f32 0.0, %v357
  %v359 = vpop.f32.mrf.mxu0
  %360 = vmatprep.mubr.bf16.mxu0 0
  %361 = vmatmul.mubr.bf16.gmra.mxu0 %v104
  %v362 = vpop.f32.mrf.mxu0
  %v363 = vadd.f32 0.0, %v362
  %v364 = vpop.f32.mrf.mxu0
  %v365 = vpop.f32.mrf.mxu0
  %v366 = vadd.f32 0.0, %v365
  %v367 = vpop.f32.mrf.mxu0
  %368 = vmatprep.mubr.bf16.mxu0 0
  %369 = vmatmul.mubr.bf16.gmra.mxu0 %v105
  %v370 = vpop.f32.mrf.mxu0
  %v371 = vadd.f32 0.0, %v370
  %v372 = vpop.f32.mrf.mxu0
  %v373 = vpop.f32.mrf.mxu0
  %v374 = vadd.f32 0.0, %v373
  %v375 = vpop.f32.mrf.mxu0
  %376 = vmatprep.mubr.bf16.mxu0 0
  %377 = vmatmul.mubr.bf16.gmra.mxu0 %v106
  %v378 = vpop.f32.mrf.mxu0
  %v379 = vadd.f32 0.0, %v378
  %v380 = vpop.f32.mrf.mxu0
  %v381 = vpop.f32.mrf.mxu0
  %v382 = vadd.f32 0.0, %v381
  %v383 = vpop.f32.mrf.mxu0
  %384 = vmatprep.mubr.bf16.mxu0 0
  %385 = vmatmul.mubr.bf16.gmra.mxu0 %v107
  %v386 = vpop.f32.mrf.mxu0
  %v387 = vadd.f32 0.0, %v386
  %v388 = vpop.f32.mrf.mxu0
  %v389 = vpop.f32.mrf.mxu0
  %v390 = vadd.f32 0.0, %v389
  %v391 = vpop.f32.mrf.mxu0
  %392 = vmatprep.mubr.bf16.mxu0 0
  %393 = vmatmul.mubr.bf16.gmra.mxu0 %v108
  %v394 = vpop.f32.mrf.mxu0
  %v395 = vadd.f32 0.0, %v394
  %v396 = vpop.f32.mrf.mxu0
  %v397 = vpop.f32.mrf.mxu0
  %v398 = vadd.f32 0.0, %v397
  %v399 = vpop.f32.mrf.mxu0
  %400 = vmatprep.mubr.bf16.mxu0 0
  %401 = vmatmul.mubr.bf16.gmra.mxu0 %v109
  %v402 = vpop.f32.mrf.mxu0
  %v403 = vadd.f32 0.0, %v402
  %v404 = vpop.f32.mrf.mxu0
  %v405 = vpop.f32.mrf.mxu0
  %v406 = vadd.f32 0.0, %v405
  %v407 = vpop.f32.mrf.mxu0
  %408 = vmatprep.mubr.bf16.mxu0 0
  %409 = vmatmul.mubr.bf16.gmra.mxu0 %v110
  %v410 = vpop.f32.mrf.mxu0
  %v411 = vadd.f32 0.0, %v410
  %v412 = vpop.f32.mrf.mxu0
  %v413 = vpop.f32.mrf.mxu0
  %v414 = vadd.f32 0.0, %v413
  %v415 = vpop.f32.mrf.mxu0
  %416 = vdwg.mxu0
  %v417 = vmul.f32 %v355, %v219
  %v418 = vmul.f32 %v358, %v224
  %v419 = vmul.f32 %v363, %v229
  %v420 = vmul.f32 %v366, %v234
  %v421 = vmul.f32 %v371, %v239
  %v422 = vmul.f32 %v374, %v244
  %v423 = vmul.f32 %v379, %v249
  %v424 = vmul.f32 %v382, %v254
  %v425 = vmul.f32 %v387, %v259
  %v426 = vmul.f32 %v390, %v264
  %v427 = vmul.f32 %v395, %v269
  %v428 = vmul.f32 %v398, %v274
  %v429 = vmul.f32 %v403, %v279
  %v430 = vmul.f32 %v406, %v284
  %v431 = vmul.f32 %v411, %v289
  %v432 = vmul.f32 %v414, %v294
  %v433 = vadd.f32 %v296, %v417
  %v434 = vadd.f32 %v297, %v418
  %v435 = vadd.f32 %v298, %v419
  %v436 = vadd.f32 %v299, %v420
  %v437 = vadd.f32 %v300, %v421
  %v438 = vadd.f32 %v301, %v422
  %v439 = vadd.f32 %v302, %v423
  %v440 = vadd.f32 %v303, %v424
  %v441 = vadd.f32 %v304, %v425
  %v442 = vadd.f32 %v305, %v426
  %v443 = vadd.f32 %v306, %v427
  %v444 = vadd.f32 %v307, %v428
  %v445 = vadd.f32 %v308, %v429
  %v446 = vadd.f32 %v309, %v430
  %v447 = vadd.f32 %v310, %v431
  %v448 = vadd.f32 %v311, %v432
  %v449 = vmul.f32 %v433, 0.5
  %v450 = vmul.f32 %v434, 0.5
  %v451 = vmul.f32 %v435, 0.5
  %v452 = vmul.f32 %v436, 0.5
  %v453 = vmul.f32 %v437, 0.5
  %v454 = vmul.f32 %v438, 0.5
  %v455 = vmul.f32 %v439, 0.5
  %v456 = vmul.f32 %v440, 0.5
  %v457 = vmul.f32 %v441, 0.5
  %v458 = vmul.f32 %v442, 0.5
  %v459 = vmul.f32 %v443, 0.5
  %v460 = vmul.f32 %v444, 0.5
  %v461 = vmul.f32 %v445, 0.5
  %v462 = vmul.f32 %v446, 0.5
  %v463 = vmul.f32 %v447, 0.5
  %v464 = vmul.f32 %v448, 0.5
  %465 = vst [vmem:[%s3] sm:$0xff] %v449
  %466 = vst [vmem:[%s3 + $0x8] sm:$0xff] %v450
  %467 = vst [vmem:[%s3 + $0x10] sm:$0xff] %v451
  %468 = vst [vmem:[%s3 + $0x18] sm:$0xff] %v452
  %469 = vst [vmem:[%s3 + $0x20] sm:$0xff] %v453
  %470 = vst [vmem:[%s3 + $0x28] sm:$0xff] %v454
  %471 = vst [vmem:[%s3 + $0x30] sm:$0xff] %v455
  %472 = vst [vmem:[%s3 + $0x38] sm:$0xff] %v456
  %473 = vst [vmem:[%s3 + $0x40] sm:$0xff] %v457
  %474 = vst [vmem:[%s3 + $0x48] sm:$0xff] %v458
  %475 = vst [vmem:[%s3 + $0x50] sm:$0xff] %v459
  %476 = vst [vmem:[%s3 + $0x58] sm:$0xff] %v460
  %477 = vst [vmem:[%s3 + $0x60] sm:$0xff] %v461
  %478 = vst [vmem:[%s3 + $0x68] sm:$0xff] %v462
  %479 = vst [vmem:[%s3 + $0x70] sm:$0xff] %v463
  %480 = vst [vmem:[%s3 + $0x78] sm:$0xff] %v464
  // Predicated region
  $region14: #{graphgcn_forward.1} parent=0 // pred_check
    _
  $region15: #{graphgcn_forward.1} parent=0 // pred_check_branch
    %482 = sbr.rel (0) target = $region17
  $region16: #{graphgcn_forward.1} parent=0 // pred_region
    _
  $region17: #{graphgcn_forward.1} parent=0 // pred_fallthru
    _
  // Predicated region
  $region18: #{graphgcn_forward.1} parent=0 // pred_check
    _
  $region19: #{graphgcn_forward.1} parent=0 // pred_check_branch
    %484 = sbr.rel (0) target = $region21
  $region20: #{graphgcn_forward.1} parent=0 // pred_region
    _
  $region21: #{graphgcn_forward.1} parent=0 // pred_fallthru
    _

// kernel: graphgcn_forward.1
$region0: #{graphgcn_forward.1}
  #allocation0 [shape = 'u32[]', space=smem, size = 0x4, offset = 0x4, fixed_abs, tag = 'smem constant byte address 0x4 - core index']
  #allocation1 [shape = 'u32[144,128]{1,0:T(1,128)}', space=vmem, size = 0x12000, scoped, tag = 'internal scratch']
  %s0 = inlined_call_operand.vmem [shape: bf16[128,128], index: 0, kind: input, shape index: {}]
  %s1 = inlined_call_operand.vmem [shape: f32[128,1], index: 1, kind: input, shape index: {}]
  %s2 = inlined_call_operand.vmem [shape: f32[128,128], index: 2, kind: input, shape index: {}]
  %s3 = inlined_call_operand.vmem [shape: f32[128,128], index: 3, kind: output, shape index: {}]
  %s4 = sld [smem:[#allocation0]]
  $region22: #{graphgcn_forward.1} parent=0
    _
  %s6 = ssub.s32 1, %s4
  %s7 = scalar_select 0, %s6, %s4
  // Predicated region
  $region2: #{graphgcn_forward.1} parent=0 // pred_check
    _
  $region3: #{graphgcn_forward.1} parent=0 // pred_check_branch
    %9 = sbr.rel (0) target = $region5
  $region4: #{graphgcn_forward.1} parent=0 // pred_region
    _
  $region5: #{graphgcn_forward.1} parent=0 // pred_fallthru
    _
  // Predicated region
  $region6: #{graphgcn_forward.1} parent=0 // pred_check
    _
  $region7: #{graphgcn_forward.1} parent=0 // pred_check_branch
    %11 = sbr.rel (0) target = $region9
  $region8: #{graphgcn_forward.1} parent=0 // pred_region
    _
  $region9: #{graphgcn_forward.1} parent=0 // pred_fallthru
    _
  // Predicated region
  $region10: #{graphgcn_forward.1} parent=0 // pred_check
    _
  $region11: #{graphgcn_forward.1} parent=0 // pred_check_branch
    %13 = sbr.rel (0) target = $region13
  $region12: #{graphgcn_forward.1} parent=0 // pred_region
    _
  $region13: #{graphgcn_forward.1} parent=0 // pred_fallthru
    _
  %v15 = vld [vmem:[%s0] sm:$0xf]
  %v16 = vld [vmem:[%s0 + $0x4] sm:$0xf]
  %v17 = vld [vmem:[%s0 + $0x8] sm:$0xf]
  %v18 = vld [vmem:[%s0 + $0xc] sm:$0xf]
  %v19 = vld [vmem:[%s0 + $0x10] sm:$0xf]
  %v20 = vld [vmem:[%s0 + $0x14] sm:$0xf]
  %v21 = vld [vmem:[%s0 + $0x18] sm:$0xf]
  %v22 = vld [vmem:[%s0 + $0x1c] sm:$0xf]
  %v23 = vld [vmem:[%s0 + $0x20] sm:$0xf]
  %v24 = vld [vmem:[%s0 + $0x24] sm:$0xf]
  %v25 = vld [vmem:[%s0 + $0x28] sm:$0xf]
  %v26 = vld [vmem:[%s0 + $0x2c] sm:$0xf]
  %v27 = vld [vmem:[%s0 + $0x30] sm:$0xf]
  %v28 = vld [vmem:[%s0 + $0x34] sm:$0xf]
  %v29 = vld [vmem:[%s0 + $0x38] sm:$0xf]
  %v30 = vld [vmem:[%s0 + $0x3c] sm:$0xf]
  %v31 = vld [vmem:[%s1] sm:$0xff]
  %v32 = vld [vmem:[%s1 + $0x8] sm:$0xff]
  %v33 = vld [vmem:[%s1 + $0x10] sm:$0xff]
  %v34 = vld [vmem:[%s1 + $0x18] sm:$0xff]
  %v35 = vld [vmem:[%s1 + $0x20] sm:$0xff]
  %v36 = vld [vmem:[%s1 + $0x28] sm:$0xff]
  %v37 = vld [vmem:[%s1 + $0x30] sm:$0xff]
  %v38 = vld [vmem:[%s1 + $0x38] sm:$0xff]
  %v39 = vld [vmem:[%s1 + $0x40] sm:$0xff]
  %v40 = vld [vmem:[%s1 + $0x48] sm:$0xff]
  %v41 = vld [vmem:[%s1 + $0x50] sm:$0xff]
  %v42 = vld [vmem:[%s1 + $0x58] sm:$0xff]
  %v43 = vld [vmem:[%s1 + $0x60] sm:$0xff]
  %v44 = vld [vmem:[%s1 + $0x68] sm:$0xff]
  %v45 = vld [vmem:[%s1 + $0x70] sm:$0xff]
  %v46 = vld [vmem:[%s1 + $0x78] sm:$0xff]
  %v47 = vld [vmem:[%s2] sm:$0xff]
  %v48 = vld [vmem:[%s2 + $0x8] sm:$0xff]
  %v49 = vld [vmem:[%s2 + $0x10] sm:$0xff]
  %v50 = vld [vmem:[%s2 + $0x18] sm:$0xff]
  %v51 = vld [vmem:[%s2 + $0x20] sm:$0xff]
  %v52 = vld [vmem:[%s2 + $0x28] sm:$0xff]
  %v53 = vld [vmem:[%s2 + $0x30] sm:$0xff]
  %v54 = vld [vmem:[%s2 + $0x38] sm:$0xff]
  %v55 = vld [vmem:[%s2 + $0x40] sm:$0xff]
  %v56 = vld [vmem:[%s2 + $0x48] sm:$0xff]
  %v57 = vld [vmem:[%s2 + $0x50] sm:$0xff]
  %v58 = vld [vmem:[%s2 + $0x58] sm:$0xff]
  %v59 = vld [vmem:[%s2 + $0x60] sm:$0xff]
  %v60 = vld [vmem:[%s2 + $0x68] sm:$0xff]
  %v61 = vld [vmem:[%s2 + $0x70] sm:$0xff]
  %v62 = vld [vmem:[%s2 + $0x78] sm:$0xff]
  %v63 = vpack.c.bf16 %v48, %v47
  %v64 = vpack.c.bf16 %v50, %v49
  %v65 = vpack.c.bf16 %v52, %v51
  %v66 = vpack.c.bf16 %v54, %v53
  %v67 = vpack.c.bf16 %v56, %v55
  %v68 = vpack.c.bf16 %v58, %v57
  %v69 = vpack.c.bf16 %v60, %v59
  %v70 = vpack.c.bf16 %v62, %v61
  %v87 = vunpack.c.l.b16 %v15
  %v88 = vunpack.c.l.b16 %v16
  %v89 = vunpack.c.l.b16 %v17
  %v90 = vunpack.c.l.b16 %v18
  %v91 = vunpack.c.l.b16 %v19
  %v92 = vunpack.c.l.b16 %v20
  %v93 = vunpack.c.l.b16 %v21
  %v94 = vunpack.c.l.b16 %v22
  %v95 = vunpack.c.l.b16 %v23
  %v96 = vunpack.c.l.b16 %v24
  %v97 = vunpack.c.l.b16 %v25
  %v98 = vunpack.c.l.b16 %v26
  %v99 = vunpack.c.l.b16 %v27
  %v100 = vunpack.c.l.b16 %v28
  %v101 = vunpack.c.l.b16 %v29
  %v102 = vunpack.c.l.b16 %v30
  %v103 = vpack.c.b16 %v88, %v87
  %v104 = vpack.c.b16 %v90, %v89
  %v105 = vpack.c.b16 %v92, %v91
  %v106 = vpack.c.b16 %v94, %v93
  %v107 = vpack.c.b16 %v96, %v95
  %v108 = vpack.c.b16 %v98, %v97
  %v109 = vpack.c.b16 %v100, %v99
  %v110 = vpack.c.b16 %v102, %v101
  %119 = vmatprep.subr.bf16.mxu0 0
  %120 = vmatpush1.bf16.msra.mxu0 %v70
  %121 = vmatprep.subr.bf16.mxu0 0
  %122 = vmatpush1.bf16.msra.mxu0 %v69
  %123 = vmatprep.subr.bf16.mxu0 0
  %124 = vmatpush1.bf16.msra.mxu0 %v68
  %125 = vmatprep.subr.bf16.mxu0 0
  %126 = vmatpush1.bf16.msra.mxu0 %v67
  %127 = vmatprep.subr.bf16.mxu0 0
  %128 = vmatpush1.bf16.msra.mxu0 %v66
  %129 = vmatprep.subr.bf16.mxu0 0
  %130 = vmatpush1.bf16.msra.mxu0 %v65
  %131 = vmatprep.subr.bf16.mxu0 0
  %132 = vmatpush1.bf16.msra.mxu0 %v64
  %133 = vmatprep.subr.bf16.mxu0 0
  %134 = vmatpush1.bf16.msra.mxu0 %v63
  %135 = vmatprep.subr.bf16.mxu0 0
  %136 = vmatpush2.bf16.msra.mxu0 0
  %137 = vmatprep.subr.bf16.mxu0 0
  %138 = vmatpush2.bf16.msra.mxu0 0
  %139 = vmatprep.subr.bf16.mxu0 0
  %140 = vmatpush2.bf16.msra.mxu0 0
  %141 = vmatprep.subr.bf16.mxu0 0
  %142 = vmatpush2.bf16.msra.mxu0 0
  %143 = vmatprep.subr.bf16.mxu0 0
  %144 = vmatpush2.bf16.msra.mxu0 0
  %145 = vmatprep.subr.bf16.mxu0 0
  %146 = vmatpush2.bf16.msra.mxu0 0
  %147 = vmatprep.subr.bf16.mxu0 0
  %148 = vmatpush2.bf16.msra.mxu0 0
  %149 = vmatprep.subr.bf16.mxu0 0
  %150 = vmatpush2.bf16.msra.mxu0 0
  %151 = vmatprep.mubr.bf16.mxu0 0
  %152 = vmatmul.mubr.bf16.gmra.mxu0 %v103
  %v153 = vpop.f32.mrf.mxu0
  %v154 = vadd.f32 0.0, %v153
  %v155 = vpop.f32.mrf.mxu0
  %v156 = vpop.f32.mrf.mxu0
  %v157 = vadd.f32 0.0, %v156
  %v158 = vpop.f32.mrf.mxu0
  %159 = vmatprep.mubr.bf16.mxu0 0
  %160 = vmatmul.mubr.bf16.gmra.mxu0 %v104
  %v161 = vpop.f32.mrf.mxu0
  %v162 = vadd.f32 0.0, %v161
  %v163 = vpop.f32.mrf.mxu0
  %v164 = vpop.f32.mrf.mxu0
  %v165 = vadd.f32 0.0, %v164
  %v166 = vpop.f32.mrf.mxu0
  %167 = vmatprep.mubr.bf16.mxu0 0
  %168 = vmatmul.mubr.bf16.gmra.mxu0 %v105
  %v169 = vpop.f32.mrf.mxu0
  %v170 = vadd.f32 0.0, %v169
  %v171 = vpop.f32.mrf.mxu0
  %v172 = vpop.f32.mrf.mxu0
  %v173 = vadd.f32 0.0, %v172
  %v174 = vpop.f32.mrf.mxu0
  %175 = vmatprep.mubr.bf16.mxu0 0
  %176 = vmatmul.mubr.bf16.gmra.mxu0 %v106
  %v177 = vpop.f32.mrf.mxu0
  %v178 = vadd.f32 0.0, %v177
  %v179 = vpop.f32.mrf.mxu0
  %v180 = vpop.f32.mrf.mxu0
  %v181 = vadd.f32 0.0, %v180
  %v182 = vpop.f32.mrf.mxu0
  %183 = vmatprep.mubr.bf16.mxu0 0
  %184 = vmatmul.mubr.bf16.gmra.mxu0 %v107
  %v185 = vpop.f32.mrf.mxu0
  %v186 = vadd.f32 0.0, %v185
  %v187 = vpop.f32.mrf.mxu0
  %v188 = vpop.f32.mrf.mxu0
  %v189 = vadd.f32 0.0, %v188
  %v190 = vpop.f32.mrf.mxu0
  %191 = vmatprep.mubr.bf16.mxu0 0
  %192 = vmatmul.mubr.bf16.gmra.mxu0 %v108
  %v193 = vpop.f32.mrf.mxu0
  %v194 = vadd.f32 0.0, %v193
  %v195 = vpop.f32.mrf.mxu0
  %v196 = vpop.f32.mrf.mxu0
  %v197 = vadd.f32 0.0, %v196
  %v198 = vpop.f32.mrf.mxu0
  %199 = vmatprep.mubr.bf16.mxu0 0
  %200 = vmatmul.mubr.bf16.gmra.mxu0 %v109
  %v201 = vpop.f32.mrf.mxu0
  %v202 = vadd.f32 0.0, %v201
  %v203 = vpop.f32.mrf.mxu0
  %v204 = vpop.f32.mrf.mxu0
  %v205 = vadd.f32 0.0, %v204
  %v206 = vpop.f32.mrf.mxu0
  %207 = vmatprep.mubr.bf16.mxu0 0
  %208 = vmatmul.mubr.bf16.gmra.mxu0 %v110
  %v209 = vpop.f32.mrf.mxu0
  %v210 = vadd.f32 0.0, %v209
  %v211 = vpop.f32.mrf.mxu0
  %v212 = vpop.f32.mrf.mxu0
  %v213 = vadd.f32 0.0, %v212
  %v214 = vpop.f32.mrf.mxu0
  %215 = vdwg.mxu0
  %217 = vset.pattern.permute.xlu0 0
  %218 = vperm.xlu0 %217, %v31
  %v219 = vpop.permute.xlu0 %218
  %222 = vset.pattern.permute.xlu0 0
  %223 = vperm.xlu0 %222, %v32
  %v224 = vpop.permute.xlu0 %223
  %227 = vset.pattern.permute.xlu0 0
  %228 = vperm.xlu0 %227, %v33
  %v229 = vpop.permute.xlu0 %228
  %232 = vset.pattern.permute.xlu0 0
  %233 = vperm.xlu0 %232, %v34
  %v234 = vpop.permute.xlu0 %233
  %237 = vset.pattern.permute.xlu0 0
  %238 = vperm.xlu0 %237, %v35
  %v239 = vpop.permute.xlu0 %238
  %242 = vset.pattern.permute.xlu0 0
  %243 = vperm.xlu0 %242, %v36
  %v244 = vpop.permute.xlu0 %243
  %247 = vset.pattern.permute.xlu0 0
  %248 = vperm.xlu0 %247, %v37
  %v249 = vpop.permute.xlu0 %248
  %252 = vset.pattern.permute.xlu0 0
  %253 = vperm.xlu0 %252, %v38
  %v254 = vpop.permute.xlu0 %253
  %257 = vset.pattern.permute.xlu0 0
  %258 = vperm.xlu0 %257, %v39
  %v259 = vpop.permute.xlu0 %258
  %262 = vset.pattern.permute.xlu0 0
  %263 = vperm.xlu0 %262, %v40
  %v264 = vpop.permute.xlu0 %263
  %267 = vset.pattern.permute.xlu0 0
  %268 = vperm.xlu0 %267, %v41
  %v269 = vpop.permute.xlu0 %268
  %272 = vset.pattern.permute.xlu0 0
  %273 = vperm.xlu0 %272, %v42
  %v274 = vpop.permute.xlu0 %273
  %277 = vset.pattern.permute.xlu0 0
  %278 = vperm.xlu0 %277, %v43
  %v279 = vpop.permute.xlu0 %278
  %282 = vset.pattern.permute.xlu0 0
  %283 = vperm.xlu0 %282, %v44
  %v284 = vpop.permute.xlu0 %283
  %287 = vset.pattern.permute.xlu0 0
  %288 = vperm.xlu0 %287, %v45
  %v289 = vpop.permute.xlu0 %288
  %292 = vset.pattern.permute.xlu0 0
  %293 = vperm.xlu0 %292, %v46
  %v294 = vpop.permute.xlu0 %293
  %v296 = vmul.f32 %v154, %v219
  %v297 = vmul.f32 %v157, %v224
  %v298 = vmul.f32 %v162, %v229
  %v299 = vmul.f32 %v165, %v234
  %v300 = vmul.f32 %v170, %v239
  %v301 = vmul.f32 %v173, %v244
  %v302 = vmul.f32 %v178, %v249
  %v303 = vmul.f32 %v181, %v254
  %v304 = vmul.f32 %v186, %v259
  %v305 = vmul.f32 %v189, %v264
  %v306 = vmul.f32 %v194, %v269
  %v307 = vmul.f32 %v197, %v274
  %v308 = vmul.f32 %v202, %v279
  %v309 = vmul.f32 %v205, %v284
  %v310 = vmul.f32 %v210, %v289
  %v311 = vmul.f32 %v213, %v294
  %v312 = vpack.c.bf16 %v297, %v296
  %v313 = vpack.c.bf16 %v299, %v298
  %v314 = vpack.c.bf16 %v301, %v300
  %v315 = vpack.c.bf16 %v303, %v302
  %v316 = vpack.c.bf16 %v305, %v304
  %v317 = vpack.c.bf16 %v307, %v306
  %v318 = vpack.c.bf16 %v309, %v308
  %v319 = vpack.c.bf16 %v311, %v310
  %320 = vmatprep.subr.bf16.mxu0 0
  %321 = vmatpush1.bf16.msra.mxu0 %v319
  %322 = vmatprep.subr.bf16.mxu0 0
  %323 = vmatpush1.bf16.msra.mxu0 %v318
  %324 = vmatprep.subr.bf16.mxu0 0
  %325 = vmatpush1.bf16.msra.mxu0 %v317
  %326 = vmatprep.subr.bf16.mxu0 0
  %327 = vmatpush1.bf16.msra.mxu0 %v316
  %328 = vmatprep.subr.bf16.mxu0 0
  %329 = vmatpush1.bf16.msra.mxu0 %v315
  %330 = vmatprep.subr.bf16.mxu0 0
  %331 = vmatpush1.bf16.msra.mxu0 %v314
  %332 = vmatprep.subr.bf16.mxu0 0
  %333 = vmatpush1.bf16.msra.mxu0 %v313
  %334 = vmatprep.subr.bf16.mxu0 0
  %335 = vmatpush1.bf16.msra.mxu0 %v312
  %336 = vmatprep.subr.bf16.mxu0 0
  %337 = vmatpush2.bf16.msra.mxu0 0
  %338 = vmatprep.subr.bf16.mxu0 0
  %339 = vmatpush2.bf16.msra.mxu0 0
  %340 = vmatprep.subr.bf16.mxu0 0
  %341 = vmatpush2.bf16.msra.mxu0 0
  %342 = vmatprep.subr.bf16.mxu0 0
  %343 = vmatpush2.bf16.msra.mxu0 0
  %344 = vmatprep.subr.bf16.mxu0 0
  %345 = vmatpush2.bf16.msra.mxu0 0
  %346 = vmatprep.subr.bf16.mxu0 0
  %347 = vmatpush2.bf16.msra.mxu0 0
  %348 = vmatprep.subr.bf16.mxu0 0
  %349 = vmatpush2.bf16.msra.mxu0 0
  %350 = vmatprep.subr.bf16.mxu0 0
  %351 = vmatpush2.bf16.msra.mxu0 0
  %352 = vmatprep.mubr.bf16.mxu0 0
  %353 = vmatmul.mubr.bf16.gmra.mxu0 %v103
  %v354 = vpop.f32.mrf.mxu0
  %v355 = vadd.f32 0.0, %v354
  %v356 = vpop.f32.mrf.mxu0
  %v357 = vpop.f32.mrf.mxu0
  %v358 = vadd.f32 0.0, %v357
  %v359 = vpop.f32.mrf.mxu0
  %360 = vmatprep.mubr.bf16.mxu0 0
  %361 = vmatmul.mubr.bf16.gmra.mxu0 %v104
  %v362 = vpop.f32.mrf.mxu0
  %v363 = vadd.f32 0.0, %v362
  %v364 = vpop.f32.mrf.mxu0
  %v365 = vpop.f32.mrf.mxu0
  %v366 = vadd.f32 0.0, %v365
  %v367 = vpop.f32.mrf.mxu0
  %368 = vmatprep.mubr.bf16.mxu0 0
  %369 = vmatmul.mubr.bf16.gmra.mxu0 %v105
  %v370 = vpop.f32.mrf.mxu0
  %v371 = vadd.f32 0.0, %v370
  %v372 = vpop.f32.mrf.mxu0
  %v373 = vpop.f32.mrf.mxu0
  %v374 = vadd.f32 0.0, %v373
  %v375 = vpop.f32.mrf.mxu0
  %376 = vmatprep.mubr.bf16.mxu0 0
  %377 = vmatmul.mubr.bf16.gmra.mxu0 %v106
  %v378 = vpop.f32.mrf.mxu0
  %v379 = vadd.f32 0.0, %v378
  %v380 = vpop.f32.mrf.mxu0
  %v381 = vpop.f32.mrf.mxu0
  %v382 = vadd.f32 0.0, %v381
  %v383 = vpop.f32.mrf.mxu0
  %384 = vmatprep.mubr.bf16.mxu0 0
  %385 = vmatmul.mubr.bf16.gmra.mxu0 %v107
  %v386 = vpop.f32.mrf.mxu0
  %v387 = vadd.f32 0.0, %v386
  %v388 = vpop.f32.mrf.mxu0
  %v389 = vpop.f32.mrf.mxu0
  %v390 = vadd.f32 0.0, %v389
  %v391 = vpop.f32.mrf.mxu0
  %392 = vmatprep.mubr.bf16.mxu0 0
  %393 = vmatmul.mubr.bf16.gmra.mxu0 %v108
  %v394 = vpop.f32.mrf.mxu0
  %v395 = vadd.f32 0.0, %v394
  %v396 = vpop.f32.mrf.mxu0
  %v397 = vpop.f32.mrf.mxu0
  %v398 = vadd.f32 0.0, %v397
  %v399 = vpop.f32.mrf.mxu0
  %400 = vmatprep.mubr.bf16.mxu0 0
  %401 = vmatmul.mubr.bf16.gmra.mxu0 %v109
  %v402 = vpop.f32.mrf.mxu0
  %v403 = vadd.f32 0.0, %v402
  %v404 = vpop.f32.mrf.mxu0
  %v405 = vpop.f32.mrf.mxu0
  %v406 = vadd.f32 0.0, %v405
  %v407 = vpop.f32.mrf.mxu0
  %408 = vmatprep.mubr.bf16.mxu0 0
  %409 = vmatmul.mubr.bf16.gmra.mxu0 %v110
  %v410 = vpop.f32.mrf.mxu0
  %v411 = vadd.f32 0.0, %v410
  %v412 = vpop.f32.mrf.mxu0
  %v413 = vpop.f32.mrf.mxu0
  %v414 = vadd.f32 0.0, %v413
  %v415 = vpop.f32.mrf.mxu0
  %416 = vdwg.mxu0
  %v417 = vmul.f32 %v355, %v219
  %v418 = vmul.f32 %v358, %v224
  %v419 = vmul.f32 %v363, %v229
  %v420 = vmul.f32 %v366, %v234
  %v421 = vmul.f32 %v371, %v239
  %v422 = vmul.f32 %v374, %v244
  %v423 = vmul.f32 %v379, %v249
  %v424 = vmul.f32 %v382, %v254
  %v425 = vmul.f32 %v387, %v259
  %v426 = vmul.f32 %v390, %v264
  %v427 = vmul.f32 %v395, %v269
  %v428 = vmul.f32 %v398, %v274
  %v429 = vmul.f32 %v403, %v279
  %v430 = vmul.f32 %v406, %v284
  %v431 = vmul.f32 %v411, %v289
  %v432 = vmul.f32 %v414, %v294
  %v433 = vadd.f32 %v296, %v417
  %v434 = vadd.f32 %v297, %v418
  %v435 = vadd.f32 %v298, %v419
  %v436 = vadd.f32 %v299, %v420
  %v437 = vadd.f32 %v300, %v421
  %v438 = vadd.f32 %v301, %v422
  %v439 = vadd.f32 %v302, %v423
  %v440 = vadd.f32 %v303, %v424
  %v441 = vadd.f32 %v304, %v425
  %v442 = vadd.f32 %v305, %v426
  %v443 = vadd.f32 %v306, %v427
  %v444 = vadd.f32 %v307, %v428
  %v445 = vadd.f32 %v308, %v429
  %v446 = vadd.f32 %v309, %v430
  %v447 = vadd.f32 %v310, %v431
  %v448 = vadd.f32 %v311, %v432
  %v449 = vmul.f32 %v433, 0.5
  %v450 = vmul.f32 %v434, 0.5
  %v451 = vmul.f32 %v435, 0.5
  %v452 = vmul.f32 %v436, 0.5
  %v453 = vmul.f32 %v437, 0.5
  %v454 = vmul.f32 %v438, 0.5
  %v455 = vmul.f32 %v439, 0.5
  %v456 = vmul.f32 %v440, 0.5
  %v457 = vmul.f32 %v441, 0.5
  %v458 = vmul.f32 %v442, 0.5
  %v459 = vmul.f32 %v443, 0.5
  %v460 = vmul.f32 %v444, 0.5
  %v461 = vmul.f32 %v445, 0.5
  %v462 = vmul.f32 %v446, 0.5
  %v463 = vmul.f32 %v447, 0.5
  %v464 = vmul.f32 %v448, 0.5
  %465 = vst [vmem:[%s3] sm:$0xff] %v449
  %466 = vst [vmem:[%s3 + $0x8] sm:$0xff] %v450
  %467 = vst [vmem:[%s3 + $0x10] sm:$0xff] %v451
  %468 = vst [vmem:[%s3 + $0x18] sm:$0xff] %v452
  %469 = vst [vmem:[%s3 + $0x20] sm:$0xff] %v453
  %470 = vst [vmem:[%s3 + $0x28] sm:$0xff] %v454
  %471 = vst [vmem:[%s3 + $0x30] sm:$0xff] %v455
  %472 = vst [vmem:[%s3 + $0x38] sm:$0xff] %v456
  %473 = vst [vmem:[%s3 + $0x40] sm:$0xff] %v457
  %474 = vst [vmem:[%s3 + $0x48] sm:$0xff] %v458
  %475 = vst [vmem:[%s3 + $0x50] sm:$0xff] %v459
  %476 = vst [vmem:[%s3 + $0x58] sm:$0xff] %v460
  %477 = vst [vmem:[%s3 + $0x60] sm:$0xff] %v461
  %478 = vst [vmem:[%s3 + $0x68] sm:$0xff] %v462
  %479 = vst [vmem:[%s3 + $0x70] sm:$0xff] %v463
  %480 = vst [vmem:[%s3 + $0x78] sm:$0xff] %v464
  // Predicated region
  $region14: #{graphgcn_forward.1} parent=0 // pred_check
    _
  $region15: #{graphgcn_forward.1} parent=0 // pred_check_branch
    %482 = sbr.rel (0) target = $region17
  $region16: #{graphgcn_forward.1} parent=0 // pred_region
    _
  $region17: #{graphgcn_forward.1} parent=0 // pred_fallthru
    _
  // Predicated region
  $region18: #{graphgcn_forward.1} parent=0 // pred_check
    _
  $region19: #{graphgcn_forward.1} parent=0 // pred_check_branch
    %484 = sbr.rel (0) target = $region21
  $region20: #{graphgcn_forward.1} parent=0 // pred_region
    _
  $region21: #{graphgcn_forward.1} parent=0 // pred_fallthru
    _

</llo_original>
